<compile_context>
chip_gen: v5e
topology: v5e:2x2
jax: 0.10.0
libtpu: 0.0.40
codegen_flags: <defaults>
</compile_context>

<pallas_src>
import functools

import jax
import jax.numpy as jnp
from jax.experimental import pallas as pl
from jax.experimental.pallas import tpu as pltpu


# --------------------------------------------------------------------------- #
# Fused single-pass kernel: pool + attention + apply, one batch per grid step
# --------------------------------------------------------------------------- #
def _fused_kernel(x1_ref, x2_ref, w1s_ref, b1_ref, w2_ref, out_ref, *, C, M, inv_L):
    x1 = x1_ref[0].astype(jnp.float32)                                   # (C, L)
    x2 = x2_ref[0].astype(jnp.float32)                                   # (C, L)

    # Global average pool of U = x1 + x2 (never materialized), kept as a column.
    s = (x1.sum(axis=-1, keepdims=True)
         + x2.sum(axis=-1, keepdims=True)) * inv_L                       # (C, 1)

    # fc1 (eval-mode BN folded into w1s / b1) + ReLU, as column-vector matmuls.
    z = jnp.dot(w1s_ref[...], s, preferred_element_type=jnp.float32) + b1_ref[...]
    z = jnp.maximum(z, 0.0)                                              # (d, 1)
    a = jnp.dot(w2_ref[...], z, preferred_element_type=jnp.float32)      # (M*C, 1)

    # Softmax over the M branch axis (branch-major channel order, matching
    # PyTorch's a_b.reshape(B, M, C, -1) on a (M*C, d) conv weight).
    logits = [a[m * C:(m + 1) * C, :] for m in range(M)]                 # each (C, 1)
    mx = logits[0]
    for t in logits[1:]:
        mx = jnp.maximum(mx, t)
    exps = [jnp.exp(t - mx) for t in logits]
    den = exps[0]
    for e in exps[1:]:
        den = den + e
    inv = pl.reciprocal(den, approx=True)   # EUP slot (otherwise idle here)

    # Only the first two branch weights are applied (forward takes two inputs).
    v = x1 * (exps[0] * inv) + x2 * (exps[1] * inv)                      # (C, L)
    out_ref[0] = v.astype(out_ref.dtype)


# --------------------------------------------------------------------------- #
# Stage A: pooled descriptor -> per-(B, C) branch attention weights
# --------------------------------------------------------------------------- #
def _pool_attn_kernel(x1_ref, x2_ref, w1t_ref, b1_ref, w2t_ref, attn_ref, acc_ref,
                      *, C, M, inv_L):
    li = pl.program_id(1)

    @pl.when(li == 0)
    def _():
        acc_ref[...] = jnp.zeros_like(acc_ref)

    # Partial pooled sum for this L tile; U = x1 + x2 is never materialized.
    acc_ref[...] += (x1_ref[...].astype(jnp.float32).sum(axis=-1)
                     + x2_ref[...].astype(jnp.float32).sum(axis=-1))

    @pl.when(li == pl.num_programs(1) - 1)
    def _():
        s = acc_ref[...] * inv_L                                            # (Bt, C)
        # fc1 (eval-mode BN scale folded into w1t, mean/beta folded into b1) + ReLU
        z = jnp.dot(s, w1t_ref[...], preferred_element_type=jnp.float32) + b1_ref[...]
        z = jnp.maximum(z, 0.0)                                             # (Bt, d)
        # fc2
        a = jnp.dot(z, w2t_ref[...], preferred_element_type=jnp.float32)   # (Bt, M*C)
        # Softmax over the M branch axis (branch-major channel order).
        logits = [a[:, m * C:(m + 1) * C] for m in range(M)]
        mx = logits[0]
        for t in logits[1:]:
            mx = jnp.maximum(mx, t)
        exps = [jnp.exp(t - mx) for t in logits]
        den = exps[0]
        for e in exps[1:]:
            den = den + e
        inv = pl.reciprocal(den, approx=True)
        for m in range(M):
            attn_ref[m, :, :] = exps[m] * inv


# --------------------------------------------------------------------------- #
# Stage B: memory-bound elementwise apply, lane-dense (B*C, L) view
# --------------------------------------------------------------------------- #
def _apply_kernel(x1_ref, x2_ref, w0_ref, w1_ref, out_ref):
    v = (x1_ref[...].astype(jnp.float32) * w0_ref[...]
         + x2_ref[...].astype(jnp.float32) * w1_ref[...])
    out_ref[...] = v.astype(out_ref.dtype)


def _tile(n, unit, cap):
    """Largest t with n % t == 0, t % unit == 0 and t <= max(cap, unit); else full n."""
    if n % unit != 0:
        return n
    t = min((max(cap, unit) // unit) * unit, n)
    while t >= unit:
        if n % t == 0:
            return t
        t -= unit
    return n


def skconv(x1, x2, w1, gamma, beta, w2, *, M=2, eps=1e-5,
           running_mean=None, running_var=None, force_two_stage=False):
    """SKConv forward.  x1/x2: (B, C, L); w1: (d, C); w2: (M*C, d); gamma/beta: (d,)."""
    assert x1.shape == x2.shape and x1.ndim == 3
    B, C, L = x1.shape
    d = w1.shape[0]
    assert w1.shape == (d, C), "fc1 weight must be (d, C)"
    assert w2.shape == (M * C, d), "fc2 weight must be (M*C, d)"
    assert M >= 2, "SKConv.forward consumes exactly two branch inputs"

    if running_mean is None:
        running_mean = jnp.zeros((d,), jnp.float32)
    if running_var is None:
        running_var = jnp.ones((d,), jnp.float32)

    # Fold eval-mode BN into fc1.
    scale = (gamma.reshape(-1).astype(jnp.float32)
             / jnp.sqrt(running_var.reshape(-1).astype(jnp.float32) + eps))
    w1s = w1.astype(jnp.float32) * scale[:, None]                         # (d, C)
    b1_vec = (beta.reshape(-1).astype(jnp.float32)
              - running_mean.reshape(-1).astype(jnp.float32) * scale)     # (d,)
    w2f = w2.astype(jnp.float32)                                          # (M*C, d)

    # ------------------ Fused single-pass path (small/medium C*L) --------- #
    slab_f32_bytes = C * L * 4
    if (not force_two_stage) and slab_f32_bytes <= (2 << 20):
        out = pl.pallas_call(
            functools.partial(_fused_kernel, C=C, M=M, inv_L=1.0 / L),
            out_shape=jax.ShapeDtypeStruct((B, C, L), x1.dtype),
            grid=(B,),
            in_specs=[
                pl.BlockSpec((1, C, L), lambda b: (b, 0, 0)),
                pl.BlockSpec((1, C, L), lambda b: (b, 0, 0)),
                pl.BlockSpec((d, C), lambda b: (0, 0)),        # resident params
                pl.BlockSpec((d, 1), lambda b: (0, 0)),
                pl.BlockSpec((M * C, d), lambda b: (0, 0)),
            ],
            out_specs=pl.BlockSpec((1, C, L), lambda b: (b, 0, 0)),
            compiler_params=pltpu.CompilerParams(
                dimension_semantics=("parallel",),
                vmem_limit_bytes=32 * 1024 * 1024),
        )(x1, x2, w1s, b1_vec[:, None], w2f)
        return out

    # ------------------ Two-stage fallback (large C*L) -------------------- #
    w1t = w1s.T                                                           # (C, d)
    b1_row = b1_vec[None, :]                                              # (1, d)
    w2t = w2f.T                                                           # (d, M*C)

    budget = 1 << 20  # ~1 MiB per input tile (fits double-buffering on v5e/v6e/v7x)

    # Stage A: attention weights (M, B, C)
    lt_a = _tile(L, 128, 2048)
    bt_a = _tile(B, 8, max(1, budget // max(1, C * lt_a * 4)))
    grid_a = (B // bt_a, L // lt_a)

    attn = pl.pallas_call(
        functools.partial(_pool_attn_kernel, C=C, M=M, inv_L=1.0 / L),
        out_shape=jax.ShapeDtypeStruct((M, B, C), jnp.float32),
        grid=grid_a,
        in_specs=[
            pl.BlockSpec((bt_a, C, lt_a), lambda b, l: (b, 0, l)),
            pl.BlockSpec((bt_a, C, lt_a), lambda b, l: (b, 0, l)),
            pl.BlockSpec((C, d), lambda b, l: (0, 0)),          # resident params
            pl.BlockSpec((1, d), lambda b, l: (0, 0)),
            pl.BlockSpec((d, M * C), lambda b, l: (0, 0)),
        ],
        out_specs=pl.BlockSpec((M, bt_a, C), lambda b, l: (0, b, 0)),
        scratch_shapes=[pltpu.VMEM((bt_a, C), jnp.float32)],
        compiler_params=pltpu.CompilerParams(
            dimension_semantics=("parallel", "arbitrary"),
            vmem_limit_bytes=32 * 1024 * 1024),
    )(x1, x2, w1t, b1_row, w2t)

    # Stage B: V = x1*w0 + x2*w1 (tiled, pipelined), lane-dense (B*C, L) view
    R = B * C
    x1f = x1.reshape(R, L)
    x2f = x2.reshape(R, L)
    w0 = attn[0].reshape(R, 1)
    w1b = attn[1].reshape(R, 1)

    lt = _tile(L, 128, 2048)
    rt = _tile(R, 8, max(1, budget // max(1, lt * 4)))
    grid_b = (R // rt, L // lt)

    out = pl.pallas_call(
        _apply_kernel,
        out_shape=jax.ShapeDtypeStruct((R, L), x1.dtype),
        grid=grid_b,
        in_specs=[
            pl.BlockSpec((rt, lt), lambda r, l: (r, l)),
            pl.BlockSpec((rt, lt), lambda r, l: (r, l)),
            pl.BlockSpec((rt, 1), lambda r, l: (r, 0)),         # invariant across l
            pl.BlockSpec((rt, 1), lambda r, l: (r, 0)),
        ],
        out_specs=pl.BlockSpec((rt, lt), lambda r, l: (r, l)),
        compiler_params=pltpu.CompilerParams(
            dimension_semantics=("parallel", "parallel"),
            vmem_limit_bytes=32 * 1024 * 1024),
    )(x1f, x2f, w0, w1b)

    return out.reshape(B, C, L)


def skconv_ref(x1, x2, w1, gamma, beta, w2, *, M=2, eps=1e-5,
               running_mean=None, running_var=None):
    """Pure-JAX reference matching the PyTorch forward (eval-mode BN)."""
    B, C, L = x1.shape
    d = w1.shape[0]
    if running_mean is None:
        running_mean = jnp.zeros((d,), jnp.float32)
    if running_var is None:
        running_var = jnp.ones((d,), jnp.float32)
    U = (x1 + x2).astype(jnp.float32)
    s = jnp.mean(U, axis=-1)                                     # (B, C)
    z = s @ w1.T                                                 # (B, d)
    z = (z - running_mean) * (gamma / jnp.sqrt(running_var + eps)) + beta
    z = jnp.maximum(z, 0.0)
    a = (z @ w2.T).reshape(B, M, C)                              # (B, M, C)
    a = jax.nn.softmax(a, axis=1)
    v = x1 * a[:, 0][:, :, None] + x2 * a[:, 1][:, :, None]
    return v.astype(x1.dtype)


if __name__ == "__main__":
    # Small shapes consistent with the module:
    #   in_channels = out_channels = C = 4, length L = 16, batch B = 2
    #   M = 2, r = 16, L_param = 32  ->  d = max(C // r, 32) = 32
    B, C, L = 2, 4, 16
    M, r, L_param = 2, 16, 32
    d = max(C // r, L_param)

    key = jax.random.PRNGKey(0)
    k1, k2, k3, k4 = jax.random.split(key, 4)

    x1 = jax.random.normal(k1, (B, C, L), dtype=jnp.float32)
    x2 = jax.random.normal(k2, (B, C, L), dtype=jnp.float32)

    # Deterministic parameter init (synthetic, not from a checkpoint).
    w1 = jax.random.normal(k3, (d, C), dtype=jnp.float32) * 0.1      # fc1 conv weight (d, C)
    gamma = jnp.ones((d,), dtype=jnp.float32)                         # BN weight
    beta = jnp.zeros((d,), dtype=jnp.float32)                         # BN bias
    w2 = jax.random.normal(k4, (M * C, d), dtype=jnp.float32) * 0.1   # fc2 conv weight (M*C, d)

    ref = skconv_ref(x1, x2, w1, gamma, beta, w2, M=M)

    # Fused single-pass path (chosen automatically at these shapes).
    out_fused = jax.block_until_ready(skconv(x1, x2, w1, gamma, beta, w2, M=M))
    assert out_fused.shape == (B, C, L)
    # Tolerance accommodates pl.reciprocal(approx=True) in the softmax denominator.
    assert jnp.allclose(out_fused, ref, atol=5e-3, rtol=5e-3), "fused path mismatch vs reference"

    # Two-stage fallback path (exercised explicitly for coverage).
    out_two = jax.block_until_ready(
        skconv(x1, x2, w1, gamma, beta, w2, M=M, force_two_stage=True))
    assert jnp.allclose(out_two, ref, atol=5e-3, rtol=5e-3), "two-stage path mismatch vs reference"

    print("KERNEL_OK")
</pallas_src>

<mosaic_0001>
module attributes {stable_mosaic.version = 11 : i64} {
  func.func @_fused_kernel(%arg0: i32, %arg1: memref<1x4x16xf32, #tpu.memory_space<vmem>>, %arg2: memref<1x4x16xf32, #tpu.memory_space<vmem>>, %arg3: memref<32x4xf32, #tpu.memory_space<vmem>>, %arg4: memref<32x1xf32, #tpu.memory_space<vmem>>, %arg5: memref<8x32xf32, #tpu.memory_space<vmem>>, %arg6: memref<1x4x16xf32, #tpu.memory_space<vmem>>) attributes {dimension_semantics = [#tpu.dimension_semantics<parallel>], iteration_bounds = array<i64: 2>, scalar_prefetch = 0 : i64, scratch_operands = 0 : i64, tpu.core_type = #tpu.core_type<tc>, window_params = [{transform_indices = @transform_0, window_bounds = array<i64: 1, 4, 16>}, {transform_indices = @transform_1, window_bounds = array<i64: 1, 4, 16>}, {pipeline_mode = #tpu.pipeline_mode<synchronous>, transform_indices = @transform_2, window_bounds = array<i64: 32, 4>}, {pipeline_mode = #tpu.pipeline_mode<synchronous>, transform_indices = @transform_3, window_bounds = array<i64: 32, 1>}, {pipeline_mode = #tpu.pipeline_mode<synchronous>, transform_indices = @transform_4, window_bounds = array<i64: 8, 32>}, {transform_indices = @transform_5, window_bounds = array<i64: 1, 4, 16>}]} {
    %c0 = arith.constant 0 : index
    %c0_0 = arith.constant 0 : index
    %c0_1 = arith.constant 0 : index
    %0 = vector.load %arg1[%c0, %c0_0, %c0_1] : memref<1x4x16xf32, #tpu.memory_space<vmem>>, vector<1x4x16xf32>
    %1 = vector.shape_cast %0 : vector<1x4x16xf32> to vector<4x16xf32>
    %c0_2 = arith.constant 0 : index
    %c0_3 = arith.constant 0 : index
    %c0_4 = arith.constant 0 : index
    %2 = vector.load %arg2[%c0_2, %c0_3, %c0_4] : memref<1x4x16xf32, #tpu.memory_space<vmem>>, vector<1x4x16xf32>
    %3 = vector.shape_cast %2 : vector<1x4x16xf32> to vector<4x16xf32>
    %cst = arith.constant dense<0.000000e+00> : vector<4xf32>
    %4 = vector.multi_reduction <add>, %1, %cst [1] : vector<4x16xf32> to vector<4xf32>
    %5 = vector.shape_cast %4 : vector<4xf32> to vector<4x1xf32>
    %cst_5 = arith.constant dense<0.000000e+00> : vector<4xf32>
    %6 = vector.multi_reduction <add>, %3, %cst_5 [1] : vector<4x16xf32> to vector<4xf32>
    %7 = vector.shape_cast %6 : vector<4xf32> to vector<4x1xf32>
    %8 = arith.addf %5, %7 : vector<4x1xf32>
    %cst_6 = arith.constant 6.250000e-02 : f32
    %9 = vector.broadcast %cst_6 : f32 to vector<4x1xf32>
    %10 = arith.mulf %8, %9 : vector<4x1xf32>
    %c0_7 = arith.constant 0 : index
    %c0_8 = arith.constant 0 : index
    %11 = vector.load %arg3[%c0_7, %c0_8] : memref<32x4xf32, #tpu.memory_space<vmem>>, vector<32x4xf32>
    %cst_9 = arith.constant dense<0.000000e+00> : vector<32x1xf32>
    %12 = tpu.matmul %11, %10, %cst_9 {dimension_numbers = #tpu.dot_dimension_numbers<[1], [0], [0], [1], [0, 0, 1, 1], [], []>} : vector<32x4xf32>, vector<4x1xf32>, vector<32x1xf32> -> vector<32x1xf32>
    %c0_10 = arith.constant 0 : index
    %c0_11 = arith.constant 0 : index
    %13 = vector.load %arg4[%c0_10, %c0_11] : memref<32x1xf32, #tpu.memory_space<vmem>>, vector<32x1xf32>
    %14 = arith.addf %12, %13 : vector<32x1xf32>
    %cst_12 = arith.constant 0.000000e+00 : f32
    %15 = vector.broadcast %cst_12 : f32 to vector<32x1xf32>
    %16 = arith.maximumf %14, %15 : vector<32x1xf32>
    %c0_13 = arith.constant 0 : index
    %c0_14 = arith.constant 0 : index
    %17 = vector.load %arg5[%c0_13, %c0_14] : memref<8x32xf32, #tpu.memory_space<vmem>>, vector<8x32xf32>
    %cst_15 = arith.constant dense<0.000000e+00> : vector<8x1xf32>
    %18 = tpu.matmul %17, %16, %cst_15 {dimension_numbers = #tpu.dot_dimension_numbers<[1], [0], [0], [1], [0, 0, 1, 1], [], []>} : vector<8x32xf32>, vector<32x1xf32>, vector<8x1xf32> -> vector<8x1xf32>
    %19 = vector.extract_strided_slice %18 {offsets = [0, 0], sizes = [4, 1], strides = [1, 1]} : vector<8x1xf32> to vector<4x1xf32>
    %20 = vector.extract_strided_slice %18 {offsets = [4, 0], sizes = [4, 1], strides = [1, 1]} : vector<8x1xf32> to vector<4x1xf32>
    %21 = arith.maximumf %19, %20 : vector<4x1xf32>
    %22 = arith.subf %19, %21 : vector<4x1xf32>
    %23 = math.exp %22 : vector<4x1xf32>
    %24 = arith.subf %20, %21 : vector<4x1xf32>
    %25 = math.exp %24 : vector<4x1xf32>
    %26 = arith.addf %23, %25 : vector<4x1xf32>
    %27 = tpu.reciprocal %26 {approx = true} : vector<4x1xf32> -> vector<4x1xf32>
    %28 = arith.mulf %23, %27 : vector<4x1xf32>
    %29 = vector.broadcast %28 : vector<4x1xf32> to vector<4x16xf32>
    %30 = arith.mulf %1, %29 : vector<4x16xf32>
    %31 = arith.mulf %25, %27 : vector<4x1xf32>
    %32 = vector.broadcast %31 : vector<4x1xf32> to vector<4x16xf32>
    %33 = arith.mulf %3, %32 : vector<4x16xf32>
    %34 = arith.addf %30, %33 : vector<4x16xf32>
    %c0_16 = arith.constant 0 : index
    %c0_17 = arith.constant 0 : index
    %c0_18 = arith.constant 0 : index
    %35 = vector.load %arg6[%c0_16, %c0_17, %c0_18] : memref<1x4x16xf32, #tpu.memory_space<vmem>>, vector<1x4x16xf32>
    %36 = vector.shape_cast %35 : vector<1x4x16xf32> to vector<4x16xf32>
    %37 = vector.shape_cast %34 : vector<4x16xf32> to vector<1x4x16xf32>
    tpu.vector_store %arg6[%c0_16, %c0_17, %c0_18], %37 {strides = array<i32>} : memref<1x4x16xf32, #tpu.memory_space<vmem>>, vector<1x4x16xf32>,
    return
  }
  func.func @transform_0(%arg0: i32) -> (i32, i32, i32) {
    %c0_i32 = arith.constant 0 : i32
    %c0_i32_0 = arith.constant 0 : i32
    %c0_i32_1 = arith.constant 0 : i32
    return %arg0, %c0_i32, %c0_i32_0 : i32, i32, i32
  }
  func.func @transform_1(%arg0: i32) -> (i32, i32, i32) {
    %c0_i32 = arith.constant 0 : i32
    %c0_i32_0 = arith.constant 0 : i32
    %c0_i32_1 = arith.constant 0 : i32
    return %arg0, %c0_i32, %c0_i32_0 : i32, i32, i32
  }
  func.func @transform_2(%arg0: i32) -> (i32, i32) {
    %c0_i32 = arith.constant 0 : i32
    %c0_i32_0 = arith.constant 0 : i32
    %c0_i32_1 = arith.constant 0 : i32
    return %c0_i32, %c0_i32_0 : i32, i32
  }
  func.func @transform_3(%arg0: i32) -> (i32, i32) {
    %c0_i32 = arith.constant 0 : i32
    %c0_i32_0 = arith.constant 0 : i32
    %c0_i32_1 = arith.constant 0 : i32
    return %c0_i32, %c0_i32_0 : i32, i32
  }
  func.func @transform_4(%arg0: i32) -> (i32, i32) {
    %c0_i32 = arith.constant 0 : i32
    %c0_i32_0 = arith.constant 0 : i32
    %c0_i32_1 = arith.constant 0 : i32
    return %c0_i32, %c0_i32_0 : i32, i32
  }
  func.func @transform_5(%arg0: i32) -> (i32, i32, i32) {
    %c0_i32 = arith.constant 0 : i32
    %c0_i32_0 = arith.constant 0 : i32
    %c0_i32_1 = arith.constant 0 : i32
    return %arg0, %c0_i32, %c0_i32_0 : i32, i32, i32
  }
}

</mosaic_0001>

<llo_original>
// kernel: tpu_custom_call.1
$region0: #{tpu_custom_call.1}
  #allocation0 [shape = 'u32[]', space=smem, size = 0x4, offset = 0x4, fixed_abs, tag = 'smem constant byte address 0x4 - core index']
  #allocation1 [shape = 'u32[72,128]{1,0:T(1,128)}', space=vmem, size = 0x9000, scoped, tag = 'internal scratch']
  %s0 = inlined_call_operand.vmem [shape: f32[2,4,16], index: 0, kind: input, shape index: {}]
  %s1 = inlined_call_operand.vmem [shape: f32[2,4,16], index: 1, kind: input, shape index: {}]
  %s2 = inlined_call_operand.vmem [shape: f32[32,4], index: 2, kind: input, shape index: {}]
  %s3 = inlined_call_operand.vmem [shape: f32[32,1], index: 3, kind: input, shape index: {}]
  %s4 = inlined_call_operand.vmem [shape: f32[8,32], index: 4, kind: input, shape index: {}]
  %s5 = inlined_call_operand.hbm [shape: f32[2,4,16], index: 5, kind: output, shape index: {}]
  %s6 = sld [smem:[#allocation0]]
  $region53: #{tpu_custom_call.1} parent=0
    _
  %s8 = ssub.s32 1, %s6
  %s9 = scalar_select 0, %s8, %s6
  $region1: #{tpu_custom_call.1} parent=0
    #allocation2 [shape = 'u8[4096]{0}', space=vmem, size = 0x1000, scoped, tag = 'output window, operand 0']
    #allocation3 [shape = 's32[2]{0}', space=sflag, size = 0x8, scoped, tag = 'scoped memory for tpu_custom_call.1']
    %10 = vsyncpa [#allocation3], 0
    %s11 = scalar_lea.sflag [#allocation3], 1
    %12 = vsyncpa %s11, 0
    loop: start=0, step=1, limit=4
    $region2: #{tpu_custom_call.1} parent=1 // loop_pre_header
      _
    $region3: #{tpu_custom_call.1} parent=1 // loop_header
      %s14 = sphi 0, %s18
      %p15 = scmp.ge.s32.totalorder %s14, 4
      %s24 = sphi 0, %s26
      %s27 = sphi 0, %s24
      %s28 = sphi 0, %s27
      %s44 = sphi 0, %s28
      %s50 = sphi 0, %s52
      %s53 = sphi 0, %s50
      %s54 = sphi 0, %s53
      %s70 = sphi 0, %s54
      %s74 = sphi 0, %s74
      %s76 = sphi 0, %s74
      %s77 = sphi 0, %s76
      %s91 = sphi 0, %s77
      %s95 = sphi 0, %s95
      %s97 = sphi 0, %s95
      %s98 = sphi 0, %s97
      %s112 = sphi 0, %s98
      %s116 = sphi 0, %s116
      %s118 = sphi 0, %s116
      %s119 = sphi 0, %s118
      %s133 = sphi 0, %s119
      %s139 = sphi 0, %s141
      %s142 = sphi 0, %s139
      %s143 = sphi 0, %s142
      %s159 = sphi 0, %s143
    $region4: #{tpu_custom_call.1} parent=1 // loop_header_branch
      %17 = sbr.rel (%p15) target = $region8
    $region5: #{tpu_custom_call.1} parent=1 // loop_body
      %s19 = ssub.s32 %s14, 1
      %s20 = ssub.s32 %s14, 2
      %s21 = sadd.s32 %s14, 1
      %s22 = ssub.s32 %s14, %s21
      %p23 = scmp.eq.s32.totalorder %s22, 0
      %s25 = sadd.s32 %s24, 1
      %s26 = scalar_select %p23, %s24, %s25
      %p29 = pneg %p23
      %p30 = scmp.eq.s32.totalorder %s14, 1
      %p31 = por %p29, %p30
      %p32 = scmp.ne.s32.totalorder %s24, %s27
      %p33 = scmp.eq.s32.totalorder %s14, 0
      %p34 = por %p32, %p33
      %p35 = scmp.ne.s32.totalorder %s24, %s27
      %p36 = scmp.eq.s32.totalorder %s19, 1
      %p37 = por %p35, %p36
      %p38 = scmp.ne.s32.totalorder %s27, %s28
      %p39 = scmp.eq.s32.totalorder %s19, 0
      %p40 = por %p38, %p39
      %p41 = scmp.ne.s32.totalorder %s27, %s28
      %p42 = scmp.eq.s32.totalorder %s20, 1
      %p43 = por %p41, %p42
      %p45 = scmp.ne.s32.totalorder %s28, %s44
      %p46 = scmp.eq.s32.totalorder %s20, 0
      %p47 = por %p45, %p46
      %s48 = ssub.s32 %s14, %s21
      %p49 = scmp.eq.s32.totalorder %s48, 0
      %s51 = sadd.s32 %s50, 1
      %s52 = scalar_select %p49, %s50, %s51
      %p55 = pneg %p49
      %p56 = scmp.eq.s32.totalorder %s14, 1
      %p57 = por %p55, %p56
      %p58 = scmp.ne.s32.totalorder %s50, %s53
      %p59 = scmp.eq.s32.totalorder %s14, 0
      %p60 = por %p58, %p59
      %p61 = scmp.ne.s32.totalorder %s50, %s53
      %p62 = scmp.eq.s32.totalorder %s19, 1
      %p63 = por %p61, %p62
      %p64 = scmp.ne.s32.totalorder %s53, %s54
      %p65 = scmp.eq.s32.totalorder %s19, 0
      %p66 = por %p64, %p65
      %p67 = scmp.ne.s32.totalorder %s53, %s54
      %p68 = scmp.eq.s32.totalorder %s20, 1
      %p69 = por %p67, %p68
      %p71 = scmp.ne.s32.totalorder %s54, %s70
      %p72 = scmp.eq.s32.totalorder %s20, 0
      %p73 = por %p71, %p72
      %s75 = sadd.s32 %s74, 1
      %p78 = scmp.eq.s32.totalorder %s14, 1
      %p79 = scmp.ne.s32.totalorder %s74, %s76
      %p80 = scmp.eq.s32.totalorder %s14, 0
      %p81 = por %p79, %p80
      %p82 = scmp.ne.s32.totalorder %s74, %s76
      %p83 = scmp.eq.s32.totalorder %s19, 1
      %p84 = por %p82, %p83
      %p85 = scmp.ne.s32.totalorder %s76, %s77
      %p86 = scmp.eq.s32.totalorder %s19, 0
      %p87 = por %p85, %p86
      %p88 = scmp.ne.s32.totalorder %s76, %s77
      %p89 = scmp.eq.s32.totalorder %s20, 1
      %p90 = por %p88, %p89
      %p92 = scmp.ne.s32.totalorder %s77, %s91
      %p93 = scmp.eq.s32.totalorder %s20, 0
      %p94 = por %p92, %p93
      %s96 = sadd.s32 %s95, 1
      %p99 = scmp.eq.s32.totalorder %s14, 1
      %p100 = scmp.ne.s32.totalorder %s95, %s97
      %p101 = scmp.eq.s32.totalorder %s14, 0
      %p102 = por %p100, %p101
      %p103 = scmp.ne.s32.totalorder %s95, %s97
      %p104 = scmp.eq.s32.totalorder %s19, 1
      %p105 = por %p103, %p104
      %p106 = scmp.ne.s32.totalorder %s97, %s98
      %p107 = scmp.eq.s32.totalorder %s19, 0
      %p108 = por %p106, %p107
      %p109 = scmp.ne.s32.totalorder %s97, %s98
      %p110 = scmp.eq.s32.totalorder %s20, 1
      %p111 = por %p109, %p110
      %p113 = scmp.ne.s32.totalorder %s98, %s112
      %p114 = scmp.eq.s32.totalorder %s20, 0
      %p115 = por %p113, %p114
      %s117 = sadd.s32 %s116, 1
      %p120 = scmp.eq.s32.totalorder %s14, 1
      %p121 = scmp.ne.s32.totalorder %s116, %s118
      %p122 = scmp.eq.s32.totalorder %s14, 0
      %p123 = por %p121, %p122
      %p124 = scmp.ne.s32.totalorder %s116, %s118
      %p125 = scmp.eq.s32.totalorder %s19, 1
      %p126 = por %p124, %p125
      %p127 = scmp.ne.s32.totalorder %s118, %s119
      %p128 = scmp.eq.s32.totalorder %s19, 0
      %p129 = por %p127, %p128
      %p130 = scmp.ne.s32.totalorder %s118, %s119
      %p131 = scmp.eq.s32.totalorder %s20, 1
      %p132 = por %p130, %p131
      %p134 = scmp.ne.s32.totalorder %s119, %s133
      %p135 = scmp.eq.s32.totalorder %s20, 0
      %p136 = por %p134, %p135
      %s137 = ssub.s32 %s14, %s21
      %p138 = scmp.eq.s32.totalorder %s137, 0
      %s140 = sadd.s32 %s139, 1
      %s141 = scalar_select %p138, %s139, %s140
      %p144 = pneg %p138
      %p145 = scmp.eq.s32.totalorder %s14, 1
      %p146 = por %p144, %p145
      %p147 = scmp.ne.s32.totalorder %s139, %s142
      %p148 = scmp.eq.s32.totalorder %s14, 0
      %p149 = por %p147, %p148
      %p150 = scmp.ne.s32.totalorder %s139, %s142
      %p151 = scmp.eq.s32.totalorder %s19, 1
      %p152 = por %p150, %p151
      %p153 = scmp.ne.s32.totalorder %s142, %s143
      %p154 = scmp.eq.s32.totalorder %s19, 0
      %p155 = por %p153, %p154
      %p156 = scmp.ne.s32.totalorder %s142, %s143
      %p157 = scmp.eq.s32.totalorder %s20, 1
      %p158 = por %p156, %p157
      %p160 = scmp.ne.s32.totalorder %s143, %s159
      %p161 = scmp.eq.s32.totalorder %s20, 0
      %p162 = por %p160, %p161
      %p163 = scmp.le.s32.totalorder 1, %s14
      %p164 = scmp.lt.s32.totalorder %s14, 3
      %p165 = pnand %p163, %p164
      %p166 = pneg %p165
      // Predicated region
      $region9: #{tpu_custom_call.1} parent=5 // pred_check
        _
      $region10: #{tpu_custom_call.1} parent=5 // pred_check_branch
        %168 = sbr.rel (%p165) target = $region12
      $region11: #{tpu_custom_call.1} parent=5 // pred_region
        %s169 = ssub.s32 %s14, 1
        // Predicated region
        $region13: #{tpu_custom_call.1} parent=11 // pred_check
          %p170 = pneg %p87
        $region14: #{tpu_custom_call.1} parent=11 // pred_check_branch
          %172 = sbr.rel (%p170) target = $region16
        $region15: #{tpu_custom_call.1} parent=11 // pred_region
          _
        $region16: #{tpu_custom_call.1} parent=11 // pred_fallthru
          _
        // Predicated region
        $region17: #{tpu_custom_call.1} parent=11 // pred_check
          %p173 = pneg %p108
        $region18: #{tpu_custom_call.1} parent=11 // pred_check_branch
          %175 = sbr.rel (%p173) target = $region20
        $region19: #{tpu_custom_call.1} parent=11 // pred_region
          _
        $region20: #{tpu_custom_call.1} parent=11 // pred_fallthru
          _
        // Predicated region
        $region21: #{tpu_custom_call.1} parent=11 // pred_check
          %p176 = pneg %p129
        $region22: #{tpu_custom_call.1} parent=11 // pred_check_branch
          %178 = sbr.rel (%p176) target = $region24
        $region23: #{tpu_custom_call.1} parent=11 // pred_region
          _
        $region24: #{tpu_custom_call.1} parent=11 // pred_fallthru
          _
      $region12: #{tpu_custom_call.1} parent=5 // pred_fallthru
        _
      %p179 = scmp.lt.s32.totalorder %s14, 2
      // Predicated region
      $region25: #{tpu_custom_call.1} parent=5 // pred_check
        %p180 = pneg %p179
      $region26: #{tpu_custom_call.1} parent=5 // pred_check_branch
        %182 = sbr.rel (%p180) target = $region28
      $region27: #{tpu_custom_call.1} parent=5 // pred_region
        // Predicated region
        $region29: #{tpu_custom_call.1} parent=27 // pred_check
          %p183 = pneg %p34
        $region30: #{tpu_custom_call.1} parent=27 // pred_check_branch
          %185 = sbr.rel (%p183) target = $region32
        $region31: #{tpu_custom_call.1} parent=27 // pred_region
          %p186 = scmp.lt.s32.totalorder %s14, 1
          %s187 = scalar_select %p186, %s14, 1
          %s188 = smul.addr %s187, 4
          %s189 = scalar_lea.vmem %s0, %s188
        $region32: #{tpu_custom_call.1} parent=27 // pred_fallthru
          _
        // Predicated region
        $region33: #{tpu_custom_call.1} parent=27 // pred_check
          %p190 = pneg %p60
        $region34: #{tpu_custom_call.1} parent=27 // pred_check_branch
          %192 = sbr.rel (%p190) target = $region36
        $region35: #{tpu_custom_call.1} parent=27 // pred_region
          %p193 = scmp.lt.s32.totalorder %s14, 1
          %s194 = scalar_select %p193, %s14, 1
          %s195 = smul.addr %s194, 4
          %s196 = scalar_lea.vmem %s1, %s195
        $region36: #{tpu_custom_call.1} parent=27 // pred_fallthru
          _
      $region28: #{tpu_custom_call.1} parent=5 // pred_fallthru
        _
      %p197 = scmp.le.s32.totalorder 1, %s14
      %p198 = scmp.lt.s32.totalorder %s14, 3
      %p199 = pnand %p197, %p198
      %p200 = pneg %p199
      // Predicated region
      $region37: #{tpu_custom_call.1} parent=5 // pred_check
        _
      $region38: #{tpu_custom_call.1} parent=5 // pred_check_branch
        %202 = sbr.rel (%p199) target = $region40
      $region39: #{tpu_custom_call.1} parent=5 // pred_region
        %s203 = ssub.s32 %s14, 1
        %p204 = scmp.lt.s32.totalorder %s19, 1
        %s205 = scalar_select %p204, %s19, 1
        %s206 = smul.addr %s205, 4
        %s207 = scalar_lea.vmem %s0, %s206
        %p208 = pneg %p40
        %p209 = pneg %p37
        %p210 = scmp.lt.s32.totalorder %s19, 1
        %s211 = scalar_select %p210, %s19, 1
        %s212 = smul.addr %s211, 4
        %s213 = scalar_lea.vmem %s1, %s212
        %p214 = pneg %p66
        %p215 = pneg %p63
        %p216 = pneg %p87
        %p217 = pneg %p84
        %p218 = pneg %p108
        %p219 = pneg %p105
        %p220 = pneg %p129
        %p221 = pneg %p126
        %p222 = pneg %p155
        %p223 = pneg %p152
        %s224 = sand.u32 %s142, 1
        %s225 = scalar_lea.sflag [#allocation3], %s224
        %s226 = sand.u32 %s142, 1
        %s227 = smul.addr %s226, 4
        %s228 = scalar_lea.vmem [#allocation2], %s227
        %p229 = scmp.lt.s32.totalorder %s19, 1
        %s230 = scalar_select %p229, %s19, 1
        %s231 = smul.addr %s230, 4
        %s232 = scalar_lea.vmem %s0, %s231
        %p233 = scmp.lt.s32.totalorder %s19, 1
        %s234 = scalar_select %p233, %s19, 1
        %s235 = smul.addr %s234, 4
        %s236 = scalar_lea.vmem %s1, %s235
        %v237 = vld [vmem:[%s232] sm:$0xf]
        %v238 = vld [vmem:[%s236] sm:$0xf]
        %vm239 = vcmask 125952
        %v240 = vsel %vm239, %v237, 0.0
        %241 = vadd.xlane.f32.xlu0 %v240
        %v242 = vpop.xlane.xlu0 %241
        %v243 = vsel %vm239, %v238, 0.0
        %244 = vadd.xlane.f32.xlu0 %v243
        %v245 = vpop.xlane.xlu0 %244
        %v246 = vadd.f32 %v242, %v245
        %v247 = vmul.f32 %v246, 0.0625
        %v248 = vld [vmem:[%s2] sm:$0xff]
        %v249 = vld [vmem:[%s2 + $0x8] sm:$0xff]
        %v250 = vld [vmem:[%s2 + $0x10] sm:$0xff]
        %v251 = vld [vmem:[%s2 + $0x18] sm:$0xff]
        %v252 = vld [vmem:[%s3] sm:$0xff]
        %v253 = vld [vmem:[%s3 + $0x8] sm:$0xff]
        %v254 = vld [vmem:[%s3 + $0x10] sm:$0xff]
        %v255 = vld [vmem:[%s3 + $0x18] sm:$0xff]
        %vm256 = vcmask 31744
        %v258 = vsel %vm256, %v248, 0
        %v261 = vsel %vm256, %v249, 0
        %v264 = vsel %vm256, %v250, 0
        %v267 = vsel %vm256, %v251, 0
        %vm269 = vcmask 1043456
        %v271 = vsel %vm269, %v247, 0
        %273 = vmatpush.msra.mxu0 0.0
        %274 = vmatpush.msra.mxu0 0.0
        %275 = vmatpush.msra.mxu0 0.0
        %276 = vmatpush.msra.mxu0 0.0
        %277 = vmatpush.msra.mxu0 0.0
        %278 = vmatpush.msra.mxu0 0.0
        %279 = vmatpush.msra.mxu0 0.0
        %280 = vmatpush.msra.mxu0 0.0
        %281 = vmatpush.msra.mxu0 0.0
        %282 = vmatpush.msra.mxu0 0.0
        %283 = vmatpush.msra.mxu0 0.0
        %284 = vmatpush.msra.mxu0 0.0
        %285 = vmatpush.msra.mxu0 0.0
        %286 = vmatpush.msra.mxu0 0.0
        %287 = vmatpush.msra.mxu0 0.0
        %288 = vmatpush.msra.mxu0 %v271
        %289 = vmatmul.f32.gmra.mxu0 %v258
        %v290 = vpop.f32.mrf.mxu0
        %v291 = vadd.f32 %v252, %v290
        %292 = vmatmul.f32.gmra.mxu0 %v261
        %v293 = vpop.f32.mrf.mxu0
        %v294 = vadd.f32 %v253, %v293
        %295 = vmatmul.f32.gmra.mxu0 %v264
        %v296 = vpop.f32.mrf.mxu0
        %v297 = vadd.f32 %v254, %v296
        %298 = vmatmul.f32.gmra.mxu0 %v267
        %v299 = vpop.f32.mrf.mxu0
        %v300 = vadd.f32 %v255, %v299
        %301 = vdwg.mxu0
        %v302 = vmax.f32 %v291, 0.0
        %v303 = vmax.f32 %v294, 0.0
        %v304 = vmax.f32 %v297, 0.0
        %v305 = vmax.f32 %v300, 0.0
        %v306 = vld [vmem:[%s4] sm:$0xff]
        %vm307 = vcmask 261120
        %v309 = vsel %vm307, %v306, 0
        %311 = vmatpush.msra.mxu0 0.0
        %312 = vmatpush.msra.mxu0 0.0
        %313 = vmatpush.msra.mxu0 0.0
        %314 = vmatpush.msra.mxu0 0.0
        %315 = vmatpush.msra.mxu0 0.0
        %316 = vmatpush.msra.mxu0 0.0
        %317 = vmatpush.msra.mxu0 0.0
        %318 = vmatpush.msra.mxu0 0.0
        %319 = vmatpush.msra.mxu0 0.0
        %320 = vmatpush.msra.mxu0 0.0
        %321 = vmatpush.msra.mxu0 0.0
        %322 = vmatpush.msra.mxu0 0.0
        %323 = vmatpush.msra.mxu0 %v305
        %324 = vmatpush.msra.mxu0 %v304
        %325 = vmatpush.msra.mxu0 %v303
        %326 = vmatpush.msra.mxu0 %v302
        %327 = vmatmul.f32.gmra.mxu0 %v309
        %v328 = vpop.f32.mrf.mxu0
        %v329 = vadd.f32 0.0, %v328
        %330 = vdwg.mxu0
        %v332 = vrot.slane %v329, 4
        %v334 = vmax.f32 %v329, %v332
        %v335 = vsub.f32 %v329, %v334
        %v336 = vmul.f32 %v335, 1.442695
        %v337 = vpow.pop %v336
        %v339 = vrot.slane %v334, 4
        %v341 = vsub.f32 %v329, %v339
        %v342 = vmul.f32 %v341, 1.442695
        %v343 = vpow.pop %v342
        %v345 = vrot.slane %v343, 4
        %v347 = vadd.f32 %v337, %v345
        %v348 = vrcp.pop %v347
        %v349 = vmul.f32 %v337, %v348
        %351 = vset.pattern.permute.xlu0 0
        %352 = vperm.xlu0 %351, %v349
        %v353 = vpop.permute.xlu0 %352
        %v355 = vmul.f32 %v237, %v353
        %v357 = vrot.slane %v348, 4
        %v359 = vmul.f32 %v343, %v357
        %361 = vset.pattern.permute.xlu0 0
        %362 = vperm.xlu0 %361, %v359
        %v363 = vpop.permute.xlu0 %362
        %v364 = vrot.slane %v363, 4
        %v366 = vmul.f32 %v238, %v364
        %v367 = vadd.f32 %v355, %v366
        %368 = vst.msk [vmem:[%s228] sm:$0xf] %vm239, %v367
        %s369 = sand.u32 %s142, 1
        %s370 = scalar_lea.sflag [#allocation3], %s369
        %s371 = sand.u32 %s142, 1
        %s372 = smul.addr %s371, 4
        %s373 = scalar_lea.vmem [#allocation2], %s372
        // Predicated region
        $region41: #{tpu_custom_call.1} parent=39 // pred_check
          %p374 = pneg %p152
        $region42: #{tpu_custom_call.1} parent=39 // pred_check_branch
          %376 = sbr.rel (%p374) target = $region44
        $region43: #{tpu_custom_call.1} parent=39 // pred_region
          %378 = vsyncadd %s370, 0
          %s379 = smul.addr %s19, 4
          %s380 = scalar_lea.hbm %s5, %s379
          %s382 = sshll.u32 %s373, 4
          %s383 = int_to_ptr.vmem [resolvable:$true] %s382
          %s384 = sshll.u32 %s380, 4
          %s385 = int_to_ptr.hbm [resolvable:$true] %s384
          %387 = dma.vmem_to_hbm [thread:$0]  %s383, 64, %s385, %s370
        $region44: #{tpu_custom_call.1} parent=39 // pred_fallthru
          _
      $region40: #{tpu_custom_call.1} parent=5 // pred_fallthru
        _
      %p388 = scmp.le.s32.totalorder 2, %s14
      // Predicated region
      $region45: #{tpu_custom_call.1} parent=5 // pred_check
        %p389 = pneg %p388
      $region46: #{tpu_custom_call.1} parent=5 // pred_check_branch
        %391 = sbr.rel (%p389) target = $region48
      $region47: #{tpu_custom_call.1} parent=5 // pred_region
        %s392 = ssub.s32 %s14, 2
        // Predicated region
        $region49: #{tpu_custom_call.1} parent=47 // pred_check
          %p393 = pneg %p158
        $region50: #{tpu_custom_call.1} parent=47 // pred_check_branch
          %395 = sbr.rel (%p393) target = $region52
        $region51: #{tpu_custom_call.1} parent=47 // pred_region
          %s396 = sand.u32 %s143, 1
          %s397 = scalar_lea.sflag [#allocation3], %s396
          %s398 = sand.u32 %s143, 1
          %s399 = smul.addr %s398, 4
          %s400 = scalar_lea.vmem [#allocation2], %s399
          %402 = dma.done %s397, 64
        $region52: #{tpu_custom_call.1} parent=47 // pred_fallthru
          _
      $region48: #{tpu_custom_call.1} parent=5 // pred_fallthru
        _
    $region6: #{tpu_custom_call.1} parent=1 // loop_footer
      %s18 = sadd.s32 1, %s14
    $region7: #{tpu_custom_call.1} parent=1 // loop_footer_branch
      %13 = sbr.rel target = $region3
    $region8: #{tpu_custom_call.1} parent=1 // loop_exit
      _
    %403 = vsyncpa [#allocation3], 1
    %s404 = scalar_lea.sflag [#allocation3], 1
    %405 = vsyncpa %s404, 1

</llo_original>
